<compile_context>
chip_gen: v5e
topology: v5e:2x2
jax: 0.10.0
libtpu: 0.0.40
codegen_flags: <defaults>
</compile_context>

<pallas_src>
import jax
import jax.numpy as jnp
from jax.experimental import pallas as pl
from jax.experimental.pallas import tpu as pltpu


def _round_up(x, m):
    return ((x + m - 1) // m) * m


def _default_num_cores():
    # v7x has 2 TensorCores per chip (shard the "parallel" axis across them);
    # v5e / v6e have 1, where a second grid axis only adds padding + step overhead.
    try:
        kind = jax.devices()[0].device_kind.lower()
    except Exception:
        return 1
    return 2 if "v7" in kind else 1


def _make_loss_kernel(bce_weight, focal_weight, alpha, gamma, lanes, tm,
                      binary_targets):
    gamma_is_two = float(gamma) == 2.0
    sub_blocks = tm // 8  # tm is always a multiple of 8

    def kernel(x_ref, t_ref, out_ref):
        i = pl.program_id(1)  # reduction axis ("arbitrary")

        @pl.when(i == 0)
        def _():
            out_ref[...] = jnp.zeros_like(out_ref)

        x = x_ref[...].astype(jnp.float32)
        t = t_ref[...].astype(jnp.float32)

        # Numerically stable binary_cross_entropy_with_logits (reduction='none'):
        #   bce = max(x, 0) - x*t + log1p(exp(-|x|))
        z = jnp.exp(-jnp.abs(x))  # reused below for pt -> only 2 transcendentals/elem
        bce = jnp.maximum(x, 0.0) - x * t + jnp.log1p(z)

        if binary_targets:
            # pt = exp(-bce) algebraically for t in {0, 1}:
            #   pt = sigmoid(x) if t == 1 else 1 - sigmoid(x)
            #      = (z if (t>0.5) xor (x>=0) else 1) / (1 + z)
            # Saves one full EUP exp per element vs. exp(-bce).
            num = jnp.where((t > 0.5) != (x >= 0.0), z, 1.0)
            pt = num / (1.0 + z)
        else:
            pt = jnp.exp(-bce)  # soft-label fallback (extra transcendental)

        one_m_pt = jnp.maximum(1.0 - pt, 0.0)
        if gamma_is_two:
            focal_factor = one_m_pt * one_m_pt      # explicit square, no EUP pow
        else:
            focal_factor = one_m_pt ** gamma        # fallback for non-2 gamma

        # Fused weighted per-element loss -> a single reduction per tile.
        elem = bce * (bce_weight + focal_weight * alpha * focal_factor)

        # (tm, lanes) -> (8, lanes) with pure elementwise vreg adds (layout-free
        # reshape: sublane/lane indices unchanged).  Cross-lane fold is left to XLA.
        partial = elem.reshape(sub_blocks, 8, lanes).sum(axis=0)
        out_ref[...] += partial

    return kernel


def bce_plus_focal_loss(inputs, targets, *, bce_weight=0.5, focal_weight=0.5,
                        alpha=0.25, gamma=2.0, binary_targets=True,
                        max_tile_rows=1024, num_cores=None):
    assert inputs.shape == targets.shape
    n = inputs.size
    if num_cores is None:
        num_cores = _default_num_cores()

    # Largest lane width in {512, 256, 128} dividing N minimizes tail padding.
    lanes = 512
    for cand in (512, 256, 128):
        if n % cand == 0:
            lanes = cand
            break

    # Sublane rounding: f32 -> 8, bf16 -> 16, int8 -> 32 (packing along sublanes).
    sublane = 8
    for a in (inputs, targets):
        isz = jnp.dtype(a.dtype).itemsize
        if isz == 2:
            sublane = max(sublane, 16)
        elif isz == 1:
            sublane = max(sublane, 32)

    rows = -(-n // lanes)                                  # ceil
    tm = min(_round_up(max_tile_rows, sublane), _round_up(rows, sublane))
    total_tiles = -(-rows // tm)
    tiles_per_core = -(-total_tiles // num_cores)
    rows_padded = num_cores * tiles_per_core * tm
    n_padded = rows_padded * lanes

    x_flat = inputs.reshape(-1)
    t_flat = targets.reshape(-1)
    pad = n_padded - n
    if pad:
        # Sentinel padding: with x = -100, t = 0 we get bce == 0 and focal == 0,
        # so padded elements contribute exactly nothing -> no in-kernel masking.
        # TODO(synk): for huge inputs split the tail into its own tiny tile instead
        # of paying a full-array pad copy on this HBM-bound kernel.
        x_flat = jnp.pad(x_flat, (0, pad), constant_values=-100.0)
        t_flat = jnp.pad(t_flat, (0, pad), constant_values=0.0)
    x2d = x_flat.reshape(rows_padded, lanes)
    t2d = t_flat.reshape(rows_padded, lanes)

    kernel = _make_loss_kernel(float(bce_weight), float(focal_weight),
                               float(alpha), float(gamma), lanes, tm,
                               bool(binary_targets))

    bytes_in = n_padded * (jnp.dtype(inputs.dtype).itemsize
                           + jnp.dtype(targets.dtype).itemsize)
    cost = pl.CostEstimate(
        flops=16 * n_padded,
        transcendentals=(2 if binary_targets else 3) * n_padded,
        bytes_accessed=bytes_in + num_cores * 8 * lanes * 4,
    )

    in_map = lambda c, i: (c * tiles_per_core + i, 0)

    partials = pl.pallas_call(
        kernel,
        out_shape=jax.ShapeDtypeStruct((8 * num_cores, lanes), jnp.float32),
        grid_spec=pltpu.PrefetchScalarGridSpec(
            num_scalar_prefetch=0,
            grid=(num_cores, tiles_per_core),
            in_specs=[
                pl.BlockSpec((tm, lanes), in_map),
                pl.BlockSpec((tm, lanes), in_map),
            ],
            # One (8, lanes) block per core, VMEM-resident across the reduction axis.
            out_specs=pl.BlockSpec((8, lanes), lambda c, i: (c, 0)),
        ),
        compiler_params=pltpu.CompilerParams(
            dimension_semantics=("parallel", "arbitrary")),
        cost_estimate=cost,
    )(x2d, t2d)

    # Tiny final combine in XLA: cross-lane fold of per-core partials, then 1/N once.
    return jnp.sum(partials) * (1.0 / n)


def reference_loss(inputs, targets, *, bce_weight=0.5, focal_weight=0.5,
                   alpha=0.25, gamma=2.0):
    x = inputs.astype(jnp.float32)
    t = targets.astype(jnp.float32)
    bce = jnp.maximum(x, 0.0) - x * t + jnp.log1p(jnp.exp(-jnp.abs(x)))
    pt = jnp.exp(-bce)
    focal = alpha * (1.0 - pt) ** gamma * bce
    return bce_weight * jnp.mean(bce) + focal_weight * jnp.mean(focal)


if __name__ == "__main__":
    key = jax.random.PRNGKey(0)
    k1, k2 = jax.random.split(key)
    B, C, H, W = 2, 4, 16, 16
    logits = jax.random.normal(k1, (B, C, H, W), dtype=jnp.float32)
    targets = (jax.random.uniform(k2, (B, C, H, W)) > 0.5).astype(jnp.float32)

    loss = bce_plus_focal_loss(logits, targets)
    loss = jax.block_until_ready(loss)

    ref = reference_loss(logits, targets)
    assert jnp.allclose(loss, ref, atol=1e-5, rtol=1e-5), (loss, ref)
    print("KERNEL_OK")
</pallas_src>

<mosaic_0001>
module attributes {stable_mosaic.version = 11 : i64} {
  func.func @kernel(%arg0: i32, %arg1: i32, %arg2: memref<8x512xf32, #tpu.memory_space<vmem>>, %arg3: memref<8x512xf32, #tpu.memory_space<vmem>>, %arg4: memref<8x512xf32, #tpu.memory_space<vmem>>) attributes {dimension_semantics = [#tpu.dimension_semantics<parallel>, #tpu.dimension_semantics<arbitrary>], iteration_bounds = array<i64: 1, 1>, scalar_prefetch = 0 : i64, scratch_operands = 0 : i64, tpu.core_type = #tpu.core_type<tc>, window_params = [{transform_indices = @transform_0, window_bounds = array<i64: 8, 512>}, {transform_indices = @transform_1, window_bounds = array<i64: 8, 512>}, {transform_indices = @transform_2, window_bounds = array<i64: 8, 512>}]} {
    %c0_i32 = arith.constant 0 : i32
    %0 = arith.cmpi eq, %arg1, %c0_i32 : i32
    %1 = arith.extui %0 : i1 to i32
    %c0_i32_0 = arith.constant 0 : i32
    %2 = arith.cmpi ne, %1, %c0_i32_0 : i32
    scf.if %2 {
      %cst_18 = arith.constant 0.000000e+00 : f32
      %40 = vector.broadcast %cst_18 : f32 to vector<8x512xf32>
      %c0_19 = arith.constant 0 : index
      %c0_20 = arith.constant 0 : index
      %41 = vector.load %arg4[%c0_19, %c0_20] : memref<8x512xf32, #tpu.memory_space<vmem>>, vector<8x512xf32>
      tpu.vector_store %arg4[%c0_19, %c0_20], %40 {strides = array<i32>} : memref<8x512xf32, #tpu.memory_space<vmem>>, vector<8x512xf32>,
    } else {
    }
    %c0 = arith.constant 0 : index
    %c0_1 = arith.constant 0 : index
    %3 = vector.load %arg2[%c0, %c0_1] : memref<8x512xf32, #tpu.memory_space<vmem>>, vector<8x512xf32>
    %c0_2 = arith.constant 0 : index
    %c0_3 = arith.constant 0 : index
    %4 = vector.load %arg3[%c0_2, %c0_3] : memref<8x512xf32, #tpu.memory_space<vmem>>, vector<8x512xf32>
    %5 = math.absf %3 : vector<8x512xf32>
    %cst = arith.constant 0.000000e+00 : f32
    %6 = vector.broadcast %cst : f32 to vector<8x512xf32>
    %7 = arith.subf %6, %5 : vector<8x512xf32>
    %8 = math.exp %7 : vector<8x512xf32>
    %cst_4 = arith.constant 0.000000e+00 : f32
    %9 = vector.broadcast %cst_4 : f32 to vector<8x512xf32>
    %10 = arith.maximumf %3, %9 : vector<8x512xf32>
    %11 = arith.mulf %3, %4 : vector<8x512xf32>
    %12 = arith.subf %10, %11 : vector<8x512xf32>
    %13 = math.log1p %8 : vector<8x512xf32>
    %14 = arith.addf %12, %13 : vector<8x512xf32>
    %cst_5 = arith.constant 5.000000e-01 : f32
    %15 = vector.broadcast %cst_5 : f32 to vector<8x512xf32>
    %16 = arith.cmpf ogt, %4, %15 : vector<8x512xf32>
    %cst_6 = arith.constant 0.000000e+00 : f32
    %17 = vector.broadcast %cst_6 : f32 to vector<8x512xf32>
    %18 = arith.cmpf oge, %3, %17 : vector<8x512xf32>
    %19 = arith.xori %16, %18 : vector<8x512xi1>
    %cst_7 = arith.constant 1.000000e+00 : f32
    %20 = vector.broadcast %cst_7 : f32 to vector<8x512xf32>
    %21 = arith.select %19, %8, %20 : vector<8x512xi1>, vector<8x512xf32>
    %cst_8 = arith.constant 1.000000e+00 : f32
    %22 = vector.broadcast %cst_8 : f32 to vector<8x512xf32>
    %23 = arith.addf %22, %8 : vector<8x512xf32>
    %24 = arith.divf %21, %23 : vector<8x512xf32>
    %cst_9 = arith.constant 1.000000e+00 : f32
    %25 = vector.broadcast %cst_9 : f32 to vector<8x512xf32>
    %26 = arith.subf %25, %24 : vector<8x512xf32>
    %cst_10 = arith.constant 0.000000e+00 : f32
    %27 = vector.broadcast %cst_10 : f32 to vector<8x512xf32>
    %28 = arith.maximumf %26, %27 : vector<8x512xf32>
    %29 = arith.mulf %28, %28 : vector<8x512xf32>
    %cst_11 = arith.constant 1.250000e-01 : f32
    %30 = vector.broadcast %cst_11 : f32 to vector<8x512xf32>
    %31 = arith.mulf %30, %29 : vector<8x512xf32>
    %cst_12 = arith.constant 5.000000e-01 : f32
    %32 = vector.broadcast %cst_12 : f32 to vector<8x512xf32>
    %33 = arith.addf %32, %31 : vector<8x512xf32>
    %34 = arith.mulf %14, %33 : vector<8x512xf32>
    %35 = vector.shape_cast %34 : vector<8x512xf32> to vector<1x8x512xf32>
    %cst_13 = arith.constant dense<0.000000e+00> : vector<8x512xf32>
    %36 = vector.multi_reduction <add>, %35, %cst_13 [0] : vector<1x8x512xf32> to vector<8x512xf32>
    %c0_14 = arith.constant 0 : index
    %c0_15 = arith.constant 0 : index
    %37 = vector.load %arg4[%c0_14, %c0_15] : memref<8x512xf32, #tpu.memory_space<vmem>>, vector<8x512xf32>
    %38 = arith.addf %37, %36 : vector<8x512xf32>
    %c0_16 = arith.constant 0 : index
    %c0_17 = arith.constant 0 : index
    %39 = vector.load %arg4[%c0_16, %c0_17] : memref<8x512xf32, #tpu.memory_space<vmem>>, vector<8x512xf32>
    tpu.vector_store %arg4[%c0_16, %c0_17], %38 {strides = array<i32>} : memref<8x512xf32, #tpu.memory_space<vmem>>, vector<8x512xf32>,
    return
  }
  func.func @transform_0(%arg0: i32, %arg1: i32) -> (i32, i32) {
    %c1_i32 = arith.constant 1 : i32
    %0 = arith.muli %arg0, %c1_i32 : i32
    %1 = arith.addi %0, %arg1 : i32
    %c0_i32 = arith.constant 0 : i32
    %c0_i32_0 = arith.constant 0 : i32
    return %1, %c0_i32 : i32, i32
  }
  func.func @transform_1(%arg0: i32, %arg1: i32) -> (i32, i32) {
    %c1_i32 = arith.constant 1 : i32
    %0 = arith.muli %arg0, %c1_i32 : i32
    %1 = arith.addi %0, %arg1 : i32
    %c0_i32 = arith.constant 0 : i32
    %c0_i32_0 = arith.constant 0 : i32
    return %1, %c0_i32 : i32, i32
  }
  func.func @transform_2(%arg0: i32, %arg1: i32) -> (i32, i32) {
    %c0_i32 = arith.constant 0 : i32
    %c0_i32_0 = arith.constant 0 : i32
    return %arg0, %c0_i32 : i32, i32
  }
}

</mosaic_0001>

<llo_original>
// kernel: tpu_custom_call.1
$region0: #{tpu_custom_call.1}
  #allocation0 [shape = 'u32[]', space=smem, size = 0x4, offset = 0x4, fixed_abs, tag = 'smem constant byte address 0x4 - core index']
  #allocation1 [shape = 'u32[72,128]{1,0:T(1,128)}', space=vmem, size = 0x9000, scoped, tag = 'internal scratch']
  %s0 = inlined_call_operand.hbm [shape: f32[8,512], index: 0, kind: input, shape index: {}]
  %s1 = inlined_call_operand.hbm [shape: f32[8,512], index: 1, kind: input, shape index: {}]
  %s2 = inlined_call_operand.hbm [shape: f32[8,512], index: 2, kind: output, shape index: {}]
  %s3 = sld [smem:[#allocation0]]
  $region30: #{tpu_custom_call.1} parent=0
    _
  %s5 = ssub.s32 1, %s3
  %s6 = scalar_select 0, %s5, %s3
  $region1: #{tpu_custom_call.1} parent=0
    #allocation2 [shape = 'u8[16384]{0}', space=vmem, size = 0x4000, scoped, tag = 'input window, operand 0, single buffered']
    #allocation3 [shape = 's32[1]{0}', space=sflag, size = 0x4, scoped, tag = 'scoped memory for tpu_custom_call.1']
    #allocation4 [shape = 's32[1]{0}', space=sflag, size = 0x4, scoped, tag = 'scoped memory for tpu_custom_call.1']
    #allocation5 [shape = 'u8[16384]{0}', space=vmem, size = 0x4000, scoped, tag = 'input window, operand 1, single buffered']
    #allocation6 [shape = 's32[1]{0}', space=sflag, size = 0x4, scoped, tag = 'scoped memory for tpu_custom_call.1']
    #allocation7 [shape = 'u8[16384]{0}', space=vmem, size = 0x4000, scoped, tag = 'output window, operand 0, single buffered']
    %7 = vsyncpa [#allocation3], 0
    %8 = vsyncpa [#allocation6], 0
    %9 = vsyncpa [#allocation4], 0
    // Predicated region
    $region2: #{tpu_custom_call.1} parent=1 // pred_check
      _
    $region3: #{tpu_custom_call.1} parent=1 // pred_check_branch
      %11 = sbr.rel (0) target = $region5
    $region4: #{tpu_custom_call.1} parent=1 // pred_region
      %s12 = sadd.s32 0, 0
      %14 = vsyncadd [#allocation3], 0
      %s15 = smul.addr %s12, 4
      %s16 = smul.addr %s15, 8
      %s17 = scalar_lea.hbm %s0, %s16
      %s19 = sshll.u32 %s17, 4
      %s20 = int_to_ptr.hbm [resolvable:$true] %s19
      %s21 = sshll.u32 [#allocation2], 4
      %s22 = int_to_ptr.vmem [resolvable:$true] %s21
      %24 = dma.hbm_to_vmem [thread:$0]  %s20, 512, %s22, [#allocation3]
    $region5: #{tpu_custom_call.1} parent=1 // pred_fallthru
      _
    // Predicated region
    $region6: #{tpu_custom_call.1} parent=1 // pred_check
      _
    $region7: #{tpu_custom_call.1} parent=1 // pred_check_branch
      %26 = sbr.rel (0) target = $region9
    $region8: #{tpu_custom_call.1} parent=1 // pred_region
      %s27 = sadd.s32 0, 0
      %29 = vsyncadd [#allocation6], 0
      %s30 = smul.addr %s27, 4
      %s31 = smul.addr %s30, 8
      %s32 = scalar_lea.hbm %s1, %s31
      %s34 = sshll.u32 %s32, 4
      %s35 = int_to_ptr.hbm [resolvable:$true] %s34
      %s36 = sshll.u32 [#allocation5], 4
      %s37 = int_to_ptr.vmem [resolvable:$true] %s36
      %39 = dma.hbm_to_vmem [thread:$0]  %s35, 512, %s37, [#allocation6]
    $region9: #{tpu_custom_call.1} parent=1 // pred_fallthru
      _
    // Predicated region
    $region10: #{tpu_custom_call.1} parent=1 // pred_check
      _
    $region11: #{tpu_custom_call.1} parent=1 // pred_check_branch
      %41 = sbr.rel (0) target = $region13
    $region12: #{tpu_custom_call.1} parent=1 // pred_region
      %43 = dma.done [#allocation3], 512
    $region13: #{tpu_custom_call.1} parent=1 // pred_fallthru
      _
    // Predicated region
    $region14: #{tpu_custom_call.1} parent=1 // pred_check
      _
    $region15: #{tpu_custom_call.1} parent=1 // pred_check_branch
      %45 = sbr.rel (0) target = $region17
    $region16: #{tpu_custom_call.1} parent=1 // pred_region
      %47 = dma.done [#allocation6], 512
    $region17: #{tpu_custom_call.1} parent=1 // pred_fallthru
      _
    %s48 = sadd.s32 0, 0
    %s49 = sadd.s32 0, 0
    %p50 = scmp.eq.s32.totalorder 0, 0
    // Predicated region
    $region18: #{tpu_custom_call.1} parent=1 // pred_check
      %p51 = pneg %p50
    $region19: #{tpu_custom_call.1} parent=1 // pred_check_branch
      %53 = sbr.rel (%p51) target = $region21
    $region20: #{tpu_custom_call.1} parent=1 // pred_region
      %54 = vst [vmem:[#allocation7] sm:$0xff] 0.0
      %55 = vst [vmem:[#allocation7 + $0x8] sm:$0xff] 0.0
      %56 = vst [vmem:[#allocation7 + $0x10] sm:$0xff] 0.0
      %57 = vst [vmem:[#allocation7 + $0x18] sm:$0xff] 0.0
    $region21: #{tpu_custom_call.1} parent=1 // pred_fallthru
      _
    %v58 = vld [vmem:[#allocation2] sm:$0xff]
    %v59 = vld [vmem:[#allocation2 + $0x8] sm:$0xff]
    %v60 = vld [vmem:[#allocation2 + $0x10] sm:$0xff]
    %v61 = vld [vmem:[#allocation2 + $0x18] sm:$0xff]
    %v62 = vld [vmem:[#allocation5] sm:$0xff]
    %v63 = vld [vmem:[#allocation5 + $0x8] sm:$0xff]
    %v64 = vld [vmem:[#allocation5 + $0x10] sm:$0xff]
    %v65 = vld [vmem:[#allocation5 + $0x18] sm:$0xff]
    %v66 = vand.u32 2147483647, %v58
    %v67 = vand.u32 2147483647, %v59
    %v68 = vand.u32 2147483647, %v60
    %v69 = vand.u32 2147483647, %v61
    %v70 = vsub.f32 0.0, %v66
    %v71 = vsub.f32 0.0, %v67
    %v72 = vsub.f32 0.0, %v68
    %v73 = vsub.f32 0.0, %v69
    %v74 = vmul.f32 %v70, 1.442695
    %v75 = vpow.pop %v74
    %v76 = vmul.f32 %v71, 1.442695
    %v77 = vpow.pop %v76
    %v78 = vmul.f32 %v72, 1.442695
    %v79 = vpow.pop %v78
    %v80 = vmul.f32 %v73, 1.442695
    %v81 = vpow.pop %v80
    %v82 = vmax.f32 %v58, 0.0
    %v83 = vmax.f32 %v59, 0.0
    %v84 = vmax.f32 %v60, 0.0
    %v85 = vmax.f32 %v61, 0.0
    %v86 = vmul.f32 %v58, %v62
    %v87 = vmul.f32 %v59, %v63
    %v88 = vmul.f32 %v60, %v64
    %v89 = vmul.f32 %v61, %v65
    %v90 = vsub.f32 %v82, %v86
    %v91 = vsub.f32 %v83, %v87
    %v92 = vsub.f32 %v84, %v88
    %v93 = vsub.f32 %v85, %v89
    %v94 = vadd.f32 %v75, 1.0
    %v95 = vlog2.pop %v94
    %v96 = vmul.f32 %v95, 0.6931472
    %v97 = vmul.f32 -0.5, %v75
    %v98 = vadd.f32 %v97, 1.0
    %v99 = vmul.f32 %v98, %v75
    %v100 = vand.u32 2147483647, %v75
    %vm101 = vcmp.lt.f32.partialorder %v100, 0.0004427343
    %v102 = vsel %vm101, %v99, %v96
    %v103 = vadd.f32 %v77, 1.0
    %v104 = vlog2.pop %v103
    %v105 = vmul.f32 %v104, 0.6931472
    %v106 = vmul.f32 -0.5, %v77
    %v107 = vadd.f32 %v106, 1.0
    %v108 = vmul.f32 %v107, %v77
    %v109 = vand.u32 2147483647, %v77
    %vm110 = vcmp.lt.f32.partialorder %v109, 0.0004427343
    %v111 = vsel %vm110, %v108, %v105
    %v112 = vadd.f32 %v79, 1.0
    %v113 = vlog2.pop %v112
    %v114 = vmul.f32 %v113, 0.6931472
    %v115 = vmul.f32 -0.5, %v79
    %v116 = vadd.f32 %v115, 1.0
    %v117 = vmul.f32 %v116, %v79
    %v118 = vand.u32 2147483647, %v79
    %vm119 = vcmp.lt.f32.partialorder %v118, 0.0004427343
    %v120 = vsel %vm119, %v117, %v114
    %v121 = vadd.f32 %v81, 1.0
    %v122 = vlog2.pop %v121
    %v123 = vmul.f32 %v122, 0.6931472
    %v124 = vmul.f32 -0.5, %v81
    %v125 = vadd.f32 %v124, 1.0
    %v126 = vmul.f32 %v125, %v81
    %v127 = vand.u32 2147483647, %v81
    %vm128 = vcmp.lt.f32.partialorder %v127, 0.0004427343
    %v129 = vsel %vm128, %v126, %v123
    %v130 = vadd.f32 %v90, %v102
    %v131 = vadd.f32 %v91, %v111
    %v132 = vadd.f32 %v92, %v120
    %v133 = vadd.f32 %v93, %v129
    %vm134 = vcmp.gt.f32.partialorder %v62, 0.5
    %vm135 = vcmp.gt.f32.partialorder %v63, 0.5
    %vm136 = vcmp.gt.f32.partialorder %v64, 0.5
    %vm137 = vcmp.gt.f32.partialorder %v65, 0.5
    %vm138 = vcmp.ge.f32.partialorder %v58, 0.0
    %vm139 = vcmp.ge.f32.partialorder %v59, 0.0
    %vm140 = vcmp.ge.f32.partialorder %v60, 0.0
    %vm141 = vcmp.ge.f32.partialorder %v61, 0.0
    %vm142 = vmxor %vm134, %vm138
    %vm143 = vmxor %vm135, %vm139
    %vm144 = vmxor %vm136, %vm140
    %vm145 = vmxor %vm137, %vm141
    %v146 = vsel %vm142, %v75, 1.0
    %v147 = vsel %vm143, %v77, 1.0
    %v148 = vsel %vm144, %v79, 1.0
    %v149 = vsel %vm145, %v81, 1.0
    %v150 = vadd.f32 %v75, 1.0
    %v151 = vadd.f32 %v77, 1.0
    %v152 = vadd.f32 %v79, 1.0
    %v153 = vadd.f32 %v81, 1.0
    %v154 = vrcp.pop %v150
    %v155 = vmul.f32 %v150, %v154
    %v156 = vsub.f32 1.0, %v155
    %v157 = vmul.f32 %v154, %v156
    %v158 = vadd.f32 %v154, %v157
    %vm159 = vweird.f32 %v150
    %vm160 = vweird.f32 %v154
    %vm161 = vmor %vm159, %vm160
    %v162 = vsel %vm161, %v154, %v158
    %v163 = vand.u32 2147483647, %v150
    %vm164 = vcmp.eq.f32.partialorder %v163, 8.507059e+37
    %v165 = vand.u32 %v150, 2147483648
    %v166 = vor.u32 1.1754944e-38, %v165
    %v167 = vsel %vm164, %v166, %v162
    %v168 = vmul.f32 %v146, %v167
    %v169 = vrcp.pop %v151
    %v170 = vmul.f32 %v151, %v169
    %v171 = vsub.f32 1.0, %v170
    %v172 = vmul.f32 %v169, %v171
    %v173 = vadd.f32 %v169, %v172
    %vm174 = vweird.f32 %v151
    %vm175 = vweird.f32 %v169
    %vm176 = vmor %vm174, %vm175
    %v177 = vsel %vm176, %v169, %v173
    %v178 = vand.u32 2147483647, %v151
    %vm179 = vcmp.eq.f32.partialorder %v178, 8.507059e+37
    %v180 = vand.u32 %v151, 2147483648
    %v181 = vor.u32 1.1754944e-38, %v180
    %v182 = vsel %vm179, %v181, %v177
    %v183 = vmul.f32 %v147, %v182
    %v184 = vrcp.pop %v152
    %v185 = vmul.f32 %v152, %v184
    %v186 = vsub.f32 1.0, %v185
    %v187 = vmul.f32 %v184, %v186
    %v188 = vadd.f32 %v184, %v187
    %vm189 = vweird.f32 %v152
    %vm190 = vweird.f32 %v184
    %vm191 = vmor %vm189, %vm190
    %v192 = vsel %vm191, %v184, %v188
    %v193 = vand.u32 2147483647, %v152
    %vm194 = vcmp.eq.f32.partialorder %v193, 8.507059e+37
    %v195 = vand.u32 %v152, 2147483648
    %v196 = vor.u32 1.1754944e-38, %v195
    %v197 = vsel %vm194, %v196, %v192
    %v198 = vmul.f32 %v148, %v197
    %v199 = vrcp.pop %v153
    %v200 = vmul.f32 %v153, %v199
    %v201 = vsub.f32 1.0, %v200
    %v202 = vmul.f32 %v199, %v201
    %v203 = vadd.f32 %v199, %v202
    %vm204 = vweird.f32 %v153
    %vm205 = vweird.f32 %v199
    %vm206 = vmor %vm204, %vm205
    %v207 = vsel %vm206, %v199, %v203
    %v208 = vand.u32 2147483647, %v153
    %vm209 = vcmp.eq.f32.partialorder %v208, 8.507059e+37
    %v210 = vand.u32 %v153, 2147483648
    %v211 = vor.u32 1.1754944e-38, %v210
    %v212 = vsel %vm209, %v211, %v207
    %v213 = vmul.f32 %v149, %v212
    %v214 = vsub.f32 1.0, %v168
    %v215 = vsub.f32 1.0, %v183
    %v216 = vsub.f32 1.0, %v198
    %v217 = vsub.f32 1.0, %v213
    %v218 = vmax.f32 %v214, 0.0
    %v219 = vmax.f32 %v215, 0.0
    %v220 = vmax.f32 %v216, 0.0
    %v221 = vmax.f32 %v217, 0.0
    %v222 = vmul.f32 %v218, %v218
    %v223 = vmul.f32 %v219, %v219
    %v224 = vmul.f32 %v220, %v220
    %v225 = vmul.f32 %v221, %v221
    %v226 = vmul.f32 %v222, 0.125
    %v227 = vmul.f32 %v223, 0.125
    %v228 = vmul.f32 %v224, 0.125
    %v229 = vmul.f32 %v225, 0.125
    %v230 = vadd.f32 %v226, 0.5
    %v231 = vadd.f32 %v227, 0.5
    %v232 = vadd.f32 %v228, 0.5
    %v233 = vadd.f32 %v229, 0.5
    %v234 = vmul.f32 %v130, %v230
    %v235 = vmul.f32 %v131, %v231
    %v236 = vmul.f32 %v132, %v232
    %v237 = vmul.f32 %v133, %v233
    %v238 = vadd.f32 %v234, 0.0
    %v239 = vadd.f32 %v235, 0.0
    %v240 = vadd.f32 %v236, 0.0
    %v241 = vadd.f32 %v237, 0.0
    %v242 = vld [vmem:[#allocation7] sm:$0xff]
    %v243 = vld [vmem:[#allocation7 + $0x8] sm:$0xff]
    %v244 = vld [vmem:[#allocation7 + $0x10] sm:$0xff]
    %v245 = vld [vmem:[#allocation7 + $0x18] sm:$0xff]
    %v246 = vadd.f32 %v242, %v238
    %v247 = vadd.f32 %v243, %v239
    %v248 = vadd.f32 %v244, %v240
    %v249 = vadd.f32 %v245, %v241
    %250 = vst [vmem:[#allocation7] sm:$0xff] %v246
    %251 = vst [vmem:[#allocation7 + $0x8] sm:$0xff] %v247
    %252 = vst [vmem:[#allocation7 + $0x10] sm:$0xff] %v248
    %253 = vst [vmem:[#allocation7 + $0x18] sm:$0xff] %v249
    // Predicated region
    $region22: #{tpu_custom_call.1} parent=1 // pred_check
      _
    $region23: #{tpu_custom_call.1} parent=1 // pred_check_branch
      %255 = sbr.rel (0) target = $region25
    $region24: #{tpu_custom_call.1} parent=1 // pred_region
      %257 = vsyncadd [#allocation4], 0
      %s259 = sshll.u32 [#allocation7], 4
      %s260 = int_to_ptr.vmem [resolvable:$true] %s259
      %s261 = sshll.u32 %s2, 4
      %s262 = int_to_ptr.hbm [resolvable:$true] %s261
      %264 = dma.vmem_to_hbm [thread:$0]  %s260, 512, %s262, [#allocation4]
    $region25: #{tpu_custom_call.1} parent=1 // pred_fallthru
      _
    // Predicated region
    $region26: #{tpu_custom_call.1} parent=1 // pred_check
      _
    $region27: #{tpu_custom_call.1} parent=1 // pred_check_branch
      %266 = sbr.rel (0) target = $region29
    $region28: #{tpu_custom_call.1} parent=1 // pred_region
      %268 = dma.done [#allocation4], 512
    $region29: #{tpu_custom_call.1} parent=1 // pred_fallthru
      _
    %269 = vsyncpa [#allocation3], 1
    %270 = vsyncpa [#allocation6], 1
    %271 = vsyncpa [#allocation4], 1

</llo_original>
